<compile_context>
chip_gen: v7x
topology: tpu7x:2x2x1
jax: 0.10.0
libtpu: 0.0.40
codegen_flags: <defaults>
</compile_context>

<pallas_src>
import functools

import jax
import jax.numpy as jnp
from jax.experimental import pallas as pl
from jax.experimental.pallas import tpu as pltpu

CDT = jnp.bfloat16  # activation / matmul-operand storage dtype (accumulation stays f32)


# ----------------------------------------------------------------------------
# Tiling helpers
# ----------------------------------------------------------------------------
def _pick_row_block(H, W, cin_total, cout, *, cap=64, budget=6 * 1024 * 1024):
    """Largest row-block height TH dividing H whose per-step working set fits the budget."""
    for th in range(min(H, cap), 0, -1):
        if H % th:
            continue
        b_in = (th + 2) * (W + 2) * cin_total * 2          # bf16 input slabs (all groups)
        b_slab = th * W * 3 * cin_total * 2                # in-kernel K-folded slab
        b_out = th * W * cout * 2
        b_res = th * W * cout * 2
        b_acc = th * W * cout * 4
        if 2 * (b_in + b_out + b_res) + b_slab + b_acc <= budget:
            return th
    # TODO(synk): also tile along W when even a single padded row exceeds the VMEM budget.
    return 1


def _make_slabs(x, TH):
    """(N, H, W, C) -> haloed row-slab layout (N, NB, TH+2, W+2, C) in bf16.

    Built once per activation tensor and reused by every conv that consumes it
    (amortizes the halo padding instead of re-padding per conv call).
    """
    N, H, W, C = x.shape
    NB = H // TH
    xp = jnp.pad(x.astype(CDT), ((0, 0), (1, 1), (1, 1), (0, 0)))
    return jnp.stack([xp[:, i * TH:i * TH + TH + 2] for i in range(NB)], axis=1)


# ----------------------------------------------------------------------------
# Pallas kernels
# ----------------------------------------------------------------------------
def _conv3x3_kernel(*refs, G, TH, W, lrelu, alpha, res_scale, has_res):
    """Tiled 3x3 same-conv over one (batch, row-block) tile with fused epilogue.

    refs = [x_slab_0 .. x_slab_{G-1}, w_packed, bias, (residual), out, acc_scratch]
      x_slab_g : (1, 1, TH+2, W+2, Cg)   bf16 haloed row slab of input group g
      w_packed : (3, 3*Cin_total, Cout)  bf16, K laid out as (dx major, group channels minor)
      bias     : (1, Cout)               f32
      residual : (1, TH, W, Cout)        bf16  (optional: out = conv*res_scale + residual)
      out      : (1, TH, W, Cout)
      acc      : (TH*W, Cout)            f32 VMEM scratch accumulator
    """
    x_refs = refs[:G]
    w_ref = refs[G]
    b_ref = refs[G + 1]
    res_ref = refs[G + 2] if has_res else None
    o_ref = refs[-2]
    acc_ref = refs[-1]
    Cout = o_ref.shape[-1]

    acc_ref[...] = jnp.zeros_like(acc_ref)
    for dy in range(3):
        # Fold the 3 dx taps and all dense-block input groups into one K = 3*Cin_total dot.
        slab = jnp.concatenate(
            [x_refs[g][0, 0, dy:dy + TH, dx:dx + W, :]
             for dx in range(3) for g in range(G)],
            axis=-1)                                         # (TH, W, 3*Cin_total) bf16
        acc_ref[...] += jnp.dot(slab.reshape(TH * W, slab.shape[-1]), w_ref[dy],
                                preferred_element_type=jnp.float32)

    acc = acc_ref[...] + b_ref[...]                          # f32 epilogue
    if lrelu:
        acc = jnp.where(acc >= 0, acc, alpha * acc)
    if has_res:
        acc = acc * res_scale + res_ref[0].astype(jnp.float32).reshape(TH * W, Cout)
    o_ref[...] = acc.reshape(1, TH, W, Cout).astype(o_ref.dtype)


def _ca_sum_kernel(x_ref, o_ref):
    """Per-channel sum over row blocks.  o_ref: (1, C) f32, revisited along the h axis."""
    @pl.when(pl.program_id(1) == 0)
    def _():
        o_ref[...] = jnp.zeros_like(o_ref)

    x = x_ref[0].astype(jnp.float32)                         # (TH, W, C)
    o_ref[...] += jnp.sum(x.reshape(-1, x.shape[-1]), axis=0, keepdims=True)


def _ca_apply_kernel(s_ref, w1_ref, b1_ref, w2_ref, b2_ref, x_ref, r_ref, o_ref, *, inv_hw):
    """Channel attention + fused RRDB residual for one row block.

    y = sigmoid(relu(mean_hw(x) @ w1 + b1) @ w2 + b2);   out = x * y + residual
    """
    y = s_ref[...].astype(jnp.float32) * inv_hw              # (1, C) channel means
    y = jnp.dot(y, w1_ref[...], preferred_element_type=jnp.float32) + b1_ref[...]
    y = jnp.maximum(y, 0.0)
    y = jnp.dot(y, w2_ref[...], preferred_element_type=jnp.float32) + b2_ref[...]
    y = jax.nn.sigmoid(y)                                    # (1, C)
    x = x_ref[0].astype(jnp.float32)                         # (TH, W, C)
    r = r_ref[0].astype(jnp.float32)
    o_ref[0] = (x * y[0] + r).astype(o_ref.dtype)


# ----------------------------------------------------------------------------
# Pallas wrappers
# ----------------------------------------------------------------------------
def conv3x3_slabs(slabs, w, b, *, lrelu=False, alpha=0.2,
                  residual=None, res_scale=1.0, out_dtype=None):
    """3x3 conv over pre-built haloed row slabs.

    slabs: list of (N, NB, TH+2, W+2, Cg) tensors (channel groups of the logical input).
    w: (3, 3, sum(Cg), Cout) HWIO weights (f32), b: (Cout,).
    residual: optional (N, H, W, Cout) tensor; output = conv*res_scale + residual.
    """
    N, NB, THp2, Wp2, _ = slabs[0].shape
    TH, W = THp2 - 2, Wp2 - 2
    H = NB * TH
    cins = [int(s.shape[-1]) for s in slabs]
    cin_total = sum(cins)
    Cout = int(w.shape[-1])
    G = len(slabs)
    has_res = residual is not None
    out_dtype = out_dtype or CDT

    # (dy, dx, cin, cout) -> (dy, dx*cin, cout): K order = dx major, group channels minor,
    # matching the in-kernel concat order.
    wp = w.astype(CDT).reshape(3, 3 * cin_total, Cout)
    b2 = b.astype(jnp.float32).reshape(1, Cout)

    in_specs = [pl.BlockSpec((1, 1, TH + 2, W + 2, cg), lambda n, h: (n, h, 0, 0, 0))
                for cg in cins]
    in_specs += [pl.BlockSpec((3, 3 * cin_total, Cout), lambda n, h: (0, 0, 0)),
                 pl.BlockSpec((1, Cout), lambda n, h: (0, 0))]
    args = list(slabs) + [wp, b2]
    if has_res:
        in_specs.append(pl.BlockSpec((1, TH, W, Cout), lambda n, h: (n, h, 0, 0)))
        args.append(residual.astype(CDT))

    kernel = functools.partial(_conv3x3_kernel, G=G, TH=TH, W=W, lrelu=lrelu,
                               alpha=alpha, res_scale=res_scale, has_res=has_res)
    return pl.pallas_call(
        kernel,
        out_shape=jax.ShapeDtypeStruct((N, H, W, Cout), out_dtype),
        grid=(N, NB),
        in_specs=in_specs,
        out_specs=pl.BlockSpec((1, TH, W, Cout), lambda n, h: (n, h, 0, 0)),
        scratch_shapes=[pltpu.VMEM((TH * W, Cout), jnp.float32)],
        compiler_params=pltpu.CompilerParams(
            dimension_semantics=("parallel", "parallel")),
    )(*args)


def conv3x3(x, w, b, *, lrelu=False, alpha=0.2, residual=None, res_scale=1.0,
            out_dtype=None, row_block_cap=64):
    """Single-input 3x3 conv convenience wrapper (builds the haloed slab internally)."""
    N, H, W, C = x.shape
    TH = _pick_row_block(H, W, C, int(w.shape[-1]), cap=row_block_cap)
    return conv3x3_slabs([_make_slabs(x, TH)], w, b, lrelu=lrelu, alpha=alpha,
                         residual=residual, res_scale=res_scale, out_dtype=out_dtype)


def ca_layer(x_out, x_res, p, *, row_block_cap=64):
    """Channel attention with fused RRDB residual: x_out * sigmoid(mlp(mean(x_out))) + x_res."""
    N, H, W, C = x_out.shape
    Cr = int(p["w1"].shape[-1])
    TH = _pick_row_block(H, W, C, C, cap=row_block_cap)
    NB = H // TH

    # Pass 1: tiled per-channel sums (reduction axis last, accumulator output block).
    sums = pl.pallas_call(
        _ca_sum_kernel,
        out_shape=jax.ShapeDtypeStruct((N, C), jnp.float32),
        grid=(N, NB),
        in_specs=[pl.BlockSpec((1, TH, W, C), lambda n, h: (n, h, 0, 0))],
        out_specs=pl.BlockSpec((1, C), lambda n, h: (n, 0)),
        compiler_params=pltpu.CompilerParams(
            dimension_semantics=("parallel", "arbitrary")),
    )(x_out)

    # Pass 2: squeeze-excite MLP + per-channel scale + residual add, tiled over row blocks.
    kernel = functools.partial(_ca_apply_kernel, inv_hw=1.0 / float(H * W))
    return pl.pallas_call(
        kernel,
        out_shape=jax.ShapeDtypeStruct((N, H, W, C), x_out.dtype),
        grid=(N, NB),
        in_specs=[
            pl.BlockSpec((1, C), lambda n, h: (n, 0)),
            pl.BlockSpec((C, Cr), lambda n, h: (0, 0)),
            pl.BlockSpec((1, Cr), lambda n, h: (0, 0)),
            pl.BlockSpec((Cr, C), lambda n, h: (0, 0)),
            pl.BlockSpec((1, C), lambda n, h: (0, 0)),
            pl.BlockSpec((1, TH, W, C), lambda n, h: (n, h, 0, 0)),
            pl.BlockSpec((1, TH, W, C), lambda n, h: (n, h, 0, 0)),
        ],
        out_specs=pl.BlockSpec((1, TH, W, C), lambda n, h: (n, h, 0, 0)),
        compiler_params=pltpu.CompilerParams(
            dimension_semantics=("parallel", "parallel")),
    )(sums, p["w1"], p["b1"].reshape(1, Cr), p["w2"], p["b2"].reshape(1, C), x_out, x_res)


def pixel_shuffle_nhwc(x, r):
    """PixelShuffle(r) with PyTorch channel ordering, NHWC layout (pure data movement)."""
    N, H, W, Crr = x.shape
    C = Crr // (r * r)
    x = x.reshape(N, H, W, C, r, r)
    x = x.transpose(0, 1, 4, 2, 5, 3)        # N, H, i, W, j, C
    return x.reshape(N, H * r, W * r, C)


# ----------------------------------------------------------------------------
# Parameter construction (deterministic, synthetic)
# ----------------------------------------------------------------------------
def _conv_params(key, cin, cout, k=3, scale=0.05):
    kw, kb = jax.random.split(key)
    w = scale * jax.random.normal(kw, (k, k, cin, cout), jnp.float32)
    b = scale * jax.random.normal(kb, (cout,), jnp.float32)
    return w, b


def _rdb_params(key, nf, gc):
    ks = jax.random.split(key, 5)
    return {
        "conv1": _conv_params(ks[0], nf, gc),
        "conv2": _conv_params(ks[1], nf + gc, gc),
        "conv3": _conv_params(ks[2], nf + 2 * gc, gc),
        "conv4": _conv_params(ks[3], nf + 3 * gc, gc),
        "conv5": _conv_params(ks[4], nf + 4 * gc, nf),
    }


def _rrdb_params(key, nf, gc, reduction=16):
    ks = jax.random.split(key, 5)
    cr = nf // reduction
    k1w, k1b, k2w, k2b = jax.random.split(ks[3], 4)
    ca = {
        "w1": 0.05 * jax.random.normal(k1w, (nf, cr), jnp.float32),
        "b1": 0.05 * jax.random.normal(k1b, (cr,), jnp.float32),
        "w2": 0.05 * jax.random.normal(k2w, (cr, nf), jnp.float32),
        "b2": 0.05 * jax.random.normal(k2b, (nf,), jnp.float32),
    }
    return {
        "rdb1": _rdb_params(ks[0], nf, gc),
        "rdb2": _rdb_params(ks[1], nf, gc),
        "rdb3": _rdb_params(ks[2], nf, gc),
        "ca": ca,
    }


def make_generator_params(key, in_nc=3, out_nc=3, nf=64, nb=23, gc=32):
    keys = jax.random.split(key, nb + 6)
    return {
        "conv_first": _conv_params(keys[0], in_nc, nf),
        "rrdb": [_rrdb_params(keys[1 + i], nf, gc) for i in range(nb)],
        "trunk_conv": _conv_params(keys[nb + 1], nf, nf),
        "conv1": _conv_params(keys[nb + 2], nf, nf),
        "conv2": _conv_params(keys[nb + 3], nf // 4, nf),
        "HRconv": _conv_params(keys[nb + 4], nf // 4, nf),
        "conv_last": _conv_params(keys[nb + 5], nf, out_nc),
    }


# ----------------------------------------------------------------------------
# Forward pass
# ----------------------------------------------------------------------------
def _rdb_forward(p, x, cap):
    """ResidualDenseBlock_5C: dense connections via multi-group convs (no HBM concats);
    the final x5*0.2 + x residual is fused into conv5's epilogue."""
    N, H, W, nf = x.shape
    gc = int(p["conv1"][0].shape[-1])
    TH = _pick_row_block(H, W, nf + 4 * gc, nf, cap=cap)

    sx = _make_slabs(x, TH)
    x1 = conv3x3_slabs([sx], *p["conv1"], lrelu=True)
    s1 = _make_slabs(x1, TH)
    x2 = conv3x3_slabs([sx, s1], *p["conv2"], lrelu=True)
    s2 = _make_slabs(x2, TH)
    x3 = conv3x3_slabs([sx, s1, s2], *p["conv3"], lrelu=True)
    s3 = _make_slabs(x3, TH)
    x4 = conv3x3_slabs([sx, s1, s2, s3], *p["conv4"], lrelu=True)
    s4 = _make_slabs(x4, TH)
    # TODO(synk): write conv outputs directly in haloed-slab / channel-slab layout
    # (input_output_aliases) to also skip the _make_slabs repack and gc=32-wide masked stores.
    return conv3x3_slabs([sx, s1, s2, s3, s4], *p["conv5"], residual=x, res_scale=0.2)


def _rrdb_forward(p, x, cap):
    out = _rdb_forward(p["rdb1"], x, cap)
    out = _rdb_forward(p["rdb2"], out, cap)
    out = _rdb_forward(p["rdb3"], out, cap)
    # CA scale and the RRDB "out + x" residual are fused in ca_layer.
    return ca_layer(out, x, p["ca"], row_block_cap=cap)


def generator_forward(params, x_nchw, selected_layer=(), *, row_block_cap=64):
    cap = row_block_cap
    # NCHW (PyTorch) -> NHWC (kernel layout), bf16 activation storage.
    x = jnp.transpose(x_nchw, (0, 2, 3, 1)).astype(CDT)

    feature = []
    fea = conv3x3(x, *params["conv_first"], row_block_cap=cap)
    trunk = fea
    for index, rrdb_p in enumerate(params["rrdb"]):
        trunk = _rrdb_forward(rrdb_p, trunk, cap)
        if index in selected_layer:
            feature.append(jnp.transpose(trunk.astype(jnp.float32), (0, 3, 1, 2)))
    # fea = fea + trunk_conv(trunk): residual add fused into the conv epilogue.
    fea = conv3x3(trunk, *params["trunk_conv"], residual=fea, res_scale=1.0,
                  row_block_cap=cap)
    feature.append(jnp.transpose(fea.astype(jnp.float32), (0, 3, 1, 2)))

    # lrelu(pixel_shuffle(conv(x))) == pixel_shuffle(lrelu(conv(x))): lrelu fused into conv.
    fea = pixel_shuffle_nhwc(conv3x3(fea, *params["conv1"], lrelu=True, row_block_cap=cap), 2)
    fea = pixel_shuffle_nhwc(conv3x3(fea, *params["conv2"], lrelu=True, row_block_cap=cap), 2)
    feature.append(jnp.transpose(fea.astype(jnp.float32), (0, 3, 1, 2)))

    hr = conv3x3(fea, *params["HRconv"], lrelu=True, row_block_cap=cap)
    out = conv3x3(hr, *params["conv_last"], out_dtype=jnp.float32, row_block_cap=cap)
    out = jnp.transpose(out, (0, 3, 1, 2))  # back to NCHW, f32

    if len(selected_layer) == 0:
        return out
    return out, feature


# ----------------------------------------------------------------------------
# Demo
# ----------------------------------------------------------------------------
if __name__ == "__main__":
    key = jax.random.PRNGKey(0)
    kparam, kx = jax.random.split(key)

    # Small config consistent with the module (nf=64, gc=32 defaults; nb reduced).
    in_nc, out_nc, nf, nb, gc = 3, 3, 64, 2, 32
    N, H, W = 2, 8, 8

    params = make_generator_params(kparam, in_nc=in_nc, out_nc=out_nc, nf=nf,
                                   nb=nb, gc=gc)
    x = jax.random.normal(kx, (N, in_nc, H, W), jnp.float32)  # NCHW input

    # Small row-block cap so the multi-row-block tiling / reduction paths are exercised
    # even at this tiny demo resolution.
    out = generator_forward(params, x, selected_layer=(), row_block_cap=4)
    out = jax.block_until_ready(out)
    assert out.shape == (N, out_nc, H * 4, W * 4), out.shape
    assert jnp.all(jnp.isfinite(out))
    print("KERNEL_OK")
</pallas_src>

<mosaic_0001>
module attributes {stable_mosaic.version = 11 : i64} {
  func.func @_conv3x3_kernel(%arg0: i32, %arg1: i32, %arg2: memref<1x1x6x10x3xbf16, #tpu.memory_space<vmem>>, %arg3: memref<3x9x64xbf16, #tpu.memory_space<vmem>>, %arg4: memref<1x64xf32, #tpu.memory_space<vmem>>, %arg5: memref<1x4x8x64xbf16, #tpu.memory_space<vmem>>, %arg6: memref<32x64xf32, #tpu.memory_space<vmem>>) attributes {dimension_semantics = [#tpu.dimension_semantics<parallel>, #tpu.dimension_semantics<parallel>], iteration_bounds = array<i64: 2, 2>, scalar_prefetch = 0 : i64, scratch_operands = 1 : i64, tpu.core_type = #tpu.core_type<tc>, window_params = [{transform_indices = @transform_0, window_bounds = array<i64: 1, 1, 6, 10, 3>}, {pipeline_mode = #tpu.pipeline_mode<synchronous>, transform_indices = @transform_1, window_bounds = array<i64: 3, 9, 64>}, {pipeline_mode = #tpu.pipeline_mode<synchronous>, transform_indices = @transform_2, window_bounds = array<i64: 1, 64>}, {transform_indices = @transform_3, window_bounds = array<i64: 1, 4, 8, 64>}]} {
    %cst = arith.constant 0.000000e+00 : f32
    %0 = vector.broadcast %cst : f32 to vector<32x64xf32>
    %c0 = arith.constant 0 : index
    %c0_0 = arith.constant 0 : index
    %1 = vector.load %arg6[%c0, %c0_0] : memref<32x64xf32, #tpu.memory_space<vmem>>, vector<32x64xf32>
    tpu.vector_store %arg6[%c0, %c0_0], %0 {strides = array<i32>} : memref<32x64xf32, #tpu.memory_space<vmem>>, vector<32x64xf32>,
    %c0_1 = arith.constant 0 : index
    %c0_2 = arith.constant 0 : index
    %c0_3 = arith.constant 0 : index
    %c0_4 = arith.constant 0 : index
    %c0_5 = arith.constant 0 : index
    %2 = vector.load %arg2[%c0_1, %c0_2, %c0_3, %c0_4, %c0_5] : memref<1x1x6x10x3xbf16, #tpu.memory_space<vmem>>, vector<1x1x4x8x3xbf16>
    %3 = vector.shape_cast %2 : vector<1x1x4x8x3xbf16> to vector<4x8x3xbf16>
    %c0_6 = arith.constant 0 : index
    %c0_7 = arith.constant 0 : index
    %c0_8 = arith.constant 0 : index
    %c1 = arith.constant 1 : index
    %c0_9 = arith.constant 0 : index
    %4 = vector.load %arg2[%c0_6, %c0_7, %c0_8, %c1, %c0_9] : memref<1x1x6x10x3xbf16, #tpu.memory_space<vmem>>, vector<1x1x4x8x3xbf16>
    %5 = vector.shape_cast %4 : vector<1x1x4x8x3xbf16> to vector<4x8x3xbf16>
    %c0_10 = arith.constant 0 : index
    %c0_11 = arith.constant 0 : index
    %c0_12 = arith.constant 0 : index
    %c2 = arith.constant 2 : index
    %c0_13 = arith.constant 0 : index
    %6 = vector.load %arg2[%c0_10, %c0_11, %c0_12, %c2, %c0_13] : memref<1x1x6x10x3xbf16, #tpu.memory_space<vmem>>, vector<1x1x4x8x3xbf16>
    %7 = vector.shape_cast %6 : vector<1x1x4x8x3xbf16> to vector<4x8x3xbf16>
    %8 = tpu.concatenate %3, %5, %7 in 2 : vector<4x8x3xbf16>, vector<4x8x3xbf16>, vector<4x8x3xbf16> -> vector<4x8x9xbf16>
    %c0_14 = arith.constant 0 : index
    %c0_15 = arith.constant 0 : index
    %9 = vector.load %arg6[%c0_14, %c0_15] : memref<32x64xf32, #tpu.memory_space<vmem>>, vector<32x64xf32>
    %10 = vector.shape_cast %8 : vector<4x8x9xbf16> to vector<32x9xbf16>
    %c0_16 = arith.constant 0 : index
    %c0_17 = arith.constant 0 : index
    %c0_18 = arith.constant 0 : index
    %11 = vector.load %arg3[%c0_16, %c0_17, %c0_18] : memref<3x9x64xbf16, #tpu.memory_space<vmem>>, vector<1x9x64xbf16>
    %12 = vector.shape_cast %11 : vector<1x9x64xbf16> to vector<9x64xbf16>
    %cst_19 = arith.constant dense<0.000000e+00> : vector<32x64xf32>
    %13 = tpu.matmul %10, %12, %cst_19 {dimension_numbers = #tpu.dot_dimension_numbers<[1], [0], [0], [1], [0, 0, 1, 1], [], []>} : vector<32x9xbf16>, vector<9x64xbf16>, vector<32x64xf32> -> vector<32x64xf32>
    %14 = arith.addf %9, %13 : vector<32x64xf32>
    %c0_20 = arith.constant 0 : index
    %c0_21 = arith.constant 0 : index
    %15 = vector.load %arg6[%c0_20, %c0_21] : memref<32x64xf32, #tpu.memory_space<vmem>>, vector<32x64xf32>
    tpu.vector_store %arg6[%c0_20, %c0_21], %14 {strides = array<i32>} : memref<32x64xf32, #tpu.memory_space<vmem>>, vector<32x64xf32>,
    %c0_22 = arith.constant 0 : index
    %c0_23 = arith.constant 0 : index
    %c1_24 = arith.constant 1 : index
    %c0_25 = arith.constant 0 : index
    %c0_26 = arith.constant 0 : index
    %16 = vector.load %arg2[%c0_22, %c0_23, %c1_24, %c0_25, %c0_26] : memref<1x1x6x10x3xbf16, #tpu.memory_space<vmem>>, vector<1x1x4x8x3xbf16>
    %17 = vector.shape_cast %16 : vector<1x1x4x8x3xbf16> to vector<4x8x3xbf16>
    %c0_27 = arith.constant 0 : index
    %c0_28 = arith.constant 0 : index
    %c1_29 = arith.constant 1 : index
    %c1_30 = arith.constant 1 : index
    %c0_31 = arith.constant 0 : index
    %18 = vector.load %arg2[%c0_27, %c0_28, %c1_29, %c1_30, %c0_31] : memref<1x1x6x10x3xbf16, #tpu.memory_space<vmem>>, vector<1x1x4x8x3xbf16>
    %19 = vector.shape_cast %18 : vector<1x1x4x8x3xbf16> to vector<4x8x3xbf16>
    %c0_32 = arith.constant 0 : index
    %c0_33 = arith.constant 0 : index
    %c1_34 = arith.constant 1 : index
    %c2_35 = arith.constant 2 : index
    %c0_36 = arith.constant 0 : index
    %20 = vector.load %arg2[%c0_32, %c0_33, %c1_34, %c2_35, %c0_36] : memref<1x1x6x10x3xbf16, #tpu.memory_space<vmem>>, vector<1x1x4x8x3xbf16>
    %21 = vector.shape_cast %20 : vector<1x1x4x8x3xbf16> to vector<4x8x3xbf16>
    %22 = tpu.concatenate %17, %19, %21 in 2 : vector<4x8x3xbf16>, vector<4x8x3xbf16>, vector<4x8x3xbf16> -> vector<4x8x9xbf16>
    %c0_37 = arith.constant 0 : index
    %c0_38 = arith.constant 0 : index
    %23 = vector.load %arg6[%c0_37, %c0_38] : memref<32x64xf32, #tpu.memory_space<vmem>>, vector<32x64xf32>
    %24 = vector.shape_cast %22 : vector<4x8x9xbf16> to vector<32x9xbf16>
    %c1_39 = arith.constant 1 : index
    %c0_40 = arith.constant 0 : index
    %c0_41 = arith.constant 0 : index
    %25 = vector.load %arg3[%c1_39, %c0_40, %c0_41] : memref<3x9x64xbf16, #tpu.memory_space<vmem>>, vector<1x9x64xbf16>
    %26 = vector.shape_cast %25 : vector<1x9x64xbf16> to vector<9x64xbf16>
    %cst_42 = arith.constant dense<0.000000e+00> : vector<32x64xf32>
    %27 = tpu.matmul %24, %26, %cst_42 {dimension_numbers = #tpu.dot_dimension_numbers<[1], [0], [0], [1], [0, 0, 1, 1], [], []>} : vector<32x9xbf16>, vector<9x64xbf16>, vector<32x64xf32> -> vector<32x64xf32>
    %28 = arith.addf %23, %27 : vector<32x64xf32>
    %c0_43 = arith.constant 0 : index
    %c0_44 = arith.constant 0 : index
    %29 = vector.load %arg6[%c0_43, %c0_44] : memref<32x64xf32, #tpu.memory_space<vmem>>, vector<32x64xf32>
    tpu.vector_store %arg6[%c0_43, %c0_44], %28 {strides = array<i32>} : memref<32x64xf32, #tpu.memory_space<vmem>>, vector<32x64xf32>,
    %c0_45 = arith.constant 0 : index
    %c0_46 = arith.constant 0 : index
    %c2_47 = arith.constant 2 : index
    %c0_48 = arith.constant 0 : index
    %c0_49 = arith.constant 0 : index
    %30 = vector.load %arg2[%c0_45, %c0_46, %c2_47, %c0_48, %c0_49] : memref<1x1x6x10x3xbf16, #tpu.memory_space<vmem>>, vector<1x1x4x8x3xbf16>
    %31 = vector.shape_cast %30 : vector<1x1x4x8x3xbf16> to vector<4x8x3xbf16>
    %c0_50 = arith.constant 0 : index
    %c0_51 = arith.constant 0 : index
    %c2_52 = arith.constant 2 : index
    %c1_53 = arith.constant 1 : index
    %c0_54 = arith.constant 0 : index
    %32 = vector.load %arg2[%c0_50, %c0_51, %c2_52, %c1_53, %c0_54] : memref<1x1x6x10x3xbf16, #tpu.memory_space<vmem>>, vector<1x1x4x8x3xbf16>
    %33 = vector.shape_cast %32 : vector<1x1x4x8x3xbf16> to vector<4x8x3xbf16>
    %c0_55 = arith.constant 0 : index
    %c0_56 = arith.constant 0 : index
    %c2_57 = arith.constant 2 : index
    %c2_58 = arith.constant 2 : index
    %c0_59 = arith.constant 0 : index
    %34 = vector.load %arg2[%c0_55, %c0_56, %c2_57, %c2_58, %c0_59] : memref<1x1x6x10x3xbf16, #tpu.memory_space<vmem>>, vector<1x1x4x8x3xbf16>
    %35 = vector.shape_cast %34 : vector<1x1x4x8x3xbf16> to vector<4x8x3xbf16>
    %36 = tpu.concatenate %31, %33, %35 in 2 : vector<4x8x3xbf16>, vector<4x8x3xbf16>, vector<4x8x3xbf16> -> vector<4x8x9xbf16>
    %c0_60 = arith.constant 0 : index
    %c0_61 = arith.constant 0 : index
    %37 = vector.load %arg6[%c0_60, %c0_61] : memref<32x64xf32, #tpu.memory_space<vmem>>, vector<32x64xf32>
    %38 = vector.shape_cast %36 : vector<4x8x9xbf16> to vector<32x9xbf16>
    %c2_62 = arith.constant 2 : index
    %c0_63 = arith.constant 0 : index
    %c0_64 = arith.constant 0 : index
    %39 = vector.load %arg3[%c2_62, %c0_63, %c0_64] : memref<3x9x64xbf16, #tpu.memory_space<vmem>>, vector<1x9x64xbf16>
    %40 = vector.shape_cast %39 : vector<1x9x64xbf16> to vector<9x64xbf16>
    %cst_65 = arith.constant dense<0.000000e+00> : vector<32x64xf32>
    %41 = tpu.matmul %38, %40, %cst_65 {dimension_numbers = #tpu.dot_dimension_numbers<[1], [0], [0], [1], [0, 0, 1, 1], [], []>} : vector<32x9xbf16>, vector<9x64xbf16>, vector<32x64xf32> -> vector<32x64xf32>
    %42 = arith.addf %37, %41 : vector<32x64xf32>
    %c0_66 = arith.constant 0 : index
    %c0_67 = arith.constant 0 : index
    %43 = vector.load %arg6[%c0_66, %c0_67] : memref<32x64xf32, #tpu.memory_space<vmem>>, vector<32x64xf32>
    tpu.vector_store %arg6[%c0_66, %c0_67], %42 {strides = array<i32>} : memref<32x64xf32, #tpu.memory_space<vmem>>, vector<32x64xf32>,
    %c0_68 = arith.constant 0 : index
    %c0_69 = arith.constant 0 : index
    %44 = vector.load %arg6[%c0_68, %c0_69] : memref<32x64xf32, #tpu.memory_space<vmem>>, vector<32x64xf32>
    %c0_70 = arith.constant 0 : index
    %c0_71 = arith.constant 0 : index
    %45 = vector.load %arg4[%c0_70, %c0_71] : memref<1x64xf32, #tpu.memory_space<vmem>>, vector<1x64xf32>
    %46 = vector.broadcast %45 : vector<1x64xf32> to vector<32x64xf32>
    %47 = arith.addf %44, %46 : vector<32x64xf32>
    %48 = vector.shape_cast %47 : vector<32x64xf32> to vector<1x4x8x64xf32>
    %49 = arith.truncf %48 : vector<1x4x8x64xf32> to vector<1x4x8x64xbf16>
    %c0_72 = arith.constant 0 : index
    %c0_73 = arith.constant 0 : index
    %c0_74 = arith.constant 0 : index
    %c0_75 = arith.constant 0 : index
    %50 = vector.load %arg5[%c0_72, %c0_73, %c0_74, %c0_75] : memref<1x4x8x64xbf16, #tpu.memory_space<vmem>>, vector<1x4x8x64xbf16>
    tpu.vector_store %arg5[%c0_72, %c0_73, %c0_74, %c0_75], %49 {strides = array<i32>} : memref<1x4x8x64xbf16, #tpu.memory_space<vmem>>, vector<1x4x8x64xbf16>,
    return
  }
  func.func @transform_0(%arg0: i32, %arg1: i32) -> (i32, i32, i32, i32, i32) {
    %c0_i32 = arith.constant 0 : i32
    %c0_i32_0 = arith.constant 0 : i32
    %c0_i32_1 = arith.constant 0 : i32
    %c0_i32_2 = arith.constant 0 : i32
    return %arg0, %arg1, %c0_i32, %c0_i32_0, %c0_i32_1 : i32, i32, i32, i32, i32
  }
  func.func @transform_1(%arg0: i32, %arg1: i32) -> (i32, i32, i32) {
    %c0_i32 = arith.constant 0 : i32
    %c0_i32_0 = arith.constant 0 : i32
    %c0_i32_1 = arith.constant 0 : i32
    %c0_i32_2 = arith.constant 0 : i32
    return %c0_i32, %c0_i32_0, %c0_i32_1 : i32, i32, i32
  }
  func.func @transform_2(%arg0: i32, %arg1: i32) -> (i32, i32) {
    %c0_i32 = arith.constant 0 : i32
    %c0_i32_0 = arith.constant 0 : i32
    %c0_i32_1 = arith.constant 0 : i32
    return %c0_i32, %c0_i32_0 : i32, i32
  }
  func.func @transform_3(%arg0: i32, %arg1: i32) -> (i32, i32, i32, i32) {
    %c0_i32 = arith.constant 0 : i32
    %c0_i32_0 = arith.constant 0 : i32
    %c0_i32_1 = arith.constant 0 : i32
    return %arg0, %arg1, %c0_i32, %c0_i32_0 : i32, i32, i32, i32
  }
}

</mosaic_0001>

<llo_original>
// kernel: tpu_custom_call.1
$region0: #{tpu_custom_call.1}
  #allocation0 [shape = 'u32[]', space=smem, size = 0x4, offset = 0x4, fixed_abs, tag = 'smem constant byte address 0x4 - core index']
  #allocation1 [shape = 'u32[144,128]{1,0:T(1,128)}', space=vmem, size = 0x12000, scoped, tag = 'internal scratch']
  #allocation2 [shape = 'f32[32,64]{1,0:T(8,128)}', space=vmem, size = 0x4000, scoped, tag = 'scratch operand']
  %s0 = inlined_call_operand.vmem [shape: bf16[2,2,6,10,3], index: 0, kind: input, shape index: {}]
  %s1 = inlined_call_operand.vmem [shape: bf16[3,9,64], index: 1, kind: input, shape index: {}]
  %s2 = inlined_call_operand.vmem [shape: f32[1,64], index: 2, kind: input, shape index: {}]
  %s3 = inlined_call_operand.hbm [shape: bf16[2,8,8,64], index: 3, kind: output, shape index: {}]
  %s4 = sld [smem:[#allocation0]]
  $region45: #{tpu_custom_call.1} parent=0
    _
  %s6 = ssub.s32 1, %s4
  %s7 = scalar_select 0, %s6, %s4
  $region1: #{tpu_custom_call.1} parent=0
    #allocation3 [shape = 'u8[16384]{0}', space=vmem, size = 0x4000, scoped, tag = 'output window, operand 0']
    #allocation4 [shape = 's32[2]{0}', space=sflag, size = 0x8, scoped, tag = 'scoped memory for tpu_custom_call.1']
    %8 = vsyncpa [#allocation4], 0
    %s9 = scalar_lea.sflag [#allocation4], 1
    %10 = vsyncpa %s9, 0
    loop: start=0, step=1, limit=6
    $region2: #{tpu_custom_call.1} parent=1 // loop_pre_header
      _
    $region3: #{tpu_custom_call.1} parent=1 // loop_header
      %s12 = sphi 0, %s16
      %p13 = scmp.ge.s32.totalorder %s12, 6
      %s19 = sphi 0, %s31
      %s20 = sphi 0, %s27
      %s21 = sphi 0, %s19
      %s22 = sphi 0, %s20
      %s23 = sphi 0, %s21
      %s24 = sphi 0, %s22
      %s36 = sphi 0, %s38
      %s39 = sphi 0, %s36
      %s40 = sphi 0, %s39
      %s56 = sphi 0, %s40
      %s60 = sphi 0, %s60
      %s62 = sphi 0, %s60
      %s63 = sphi 0, %s62
      %s77 = sphi 0, %s63
      %s81 = sphi 0, %s81
      %s83 = sphi 0, %s81
      %s84 = sphi 0, %s83
      %s98 = sphi 0, %s84
      %s106 = sphi 0, %s108
      %s109 = sphi 0, %s106
      %s110 = sphi 0, %s109
      %s126 = sphi 0, %s110
    $region4: #{tpu_custom_call.1} parent=1 // loop_header_branch
      %15 = sbr.rel (%p13) target = $region8
    $region5: #{tpu_custom_call.1} parent=1 // loop_body
      %s17 = ssub.s32 %s12, 1
      %s18 = ssub.s32 %s12, 2
      %s25 = sadd.s32 1, %s20
      %p26 = scmp.ge.s32.totalorder %s25, 2
      %s27 = scalar_select %p26, 0, %s25
      %s28 = sadd.s32 1, %s19
      %s29 = scalar_select %p26, %s28, %s19
      %p30 = scmp.ge.s32.totalorder %s29, 2
      %s31 = scalar_select %p30, 0, %s29
      %s32 = ssub.s32 %s19, %s31
      %s33 = ssub.s32 %s20, %s27
      %s34 = sor.u32 %s32, %s33
      %p35 = scmp.eq.s32.totalorder %s34, 0
      %s37 = sadd.s32 %s36, 1
      %s38 = scalar_select %p35, %s36, %s37
      %p41 = pneg %p35
      %p42 = scmp.eq.s32.totalorder %s12, 3
      %p43 = por %p41, %p42
      %p44 = scmp.ne.s32.totalorder %s36, %s39
      %p45 = scmp.eq.s32.totalorder %s12, 0
      %p46 = por %p44, %p45
      %p47 = scmp.ne.s32.totalorder %s36, %s39
      %p48 = scmp.eq.s32.totalorder %s17, 3
      %p49 = por %p47, %p48
      %p50 = scmp.ne.s32.totalorder %s39, %s40
      %p51 = scmp.eq.s32.totalorder %s17, 0
      %p52 = por %p50, %p51
      %p53 = scmp.ne.s32.totalorder %s39, %s40
      %p54 = scmp.eq.s32.totalorder %s18, 3
      %p55 = por %p53, %p54
      %p57 = scmp.ne.s32.totalorder %s40, %s56
      %p58 = scmp.eq.s32.totalorder %s18, 0
      %p59 = por %p57, %p58
      %s61 = sadd.s32 %s60, 1
      %p64 = scmp.eq.s32.totalorder %s12, 3
      %p65 = scmp.ne.s32.totalorder %s60, %s62
      %p66 = scmp.eq.s32.totalorder %s12, 0
      %p67 = por %p65, %p66
      %p68 = scmp.ne.s32.totalorder %s60, %s62
      %p69 = scmp.eq.s32.totalorder %s17, 3
      %p70 = por %p68, %p69
      %p71 = scmp.ne.s32.totalorder %s62, %s63
      %p72 = scmp.eq.s32.totalorder %s17, 0
      %p73 = por %p71, %p72
      %p74 = scmp.ne.s32.totalorder %s62, %s63
      %p75 = scmp.eq.s32.totalorder %s18, 3
      %p76 = por %p74, %p75
      %p78 = scmp.ne.s32.totalorder %s63, %s77
      %p79 = scmp.eq.s32.totalorder %s18, 0
      %p80 = por %p78, %p79
      %s82 = sadd.s32 %s81, 1
      %p85 = scmp.eq.s32.totalorder %s12, 3
      %p86 = scmp.ne.s32.totalorder %s81, %s83
      %p87 = scmp.eq.s32.totalorder %s12, 0
      %p88 = por %p86, %p87
      %p89 = scmp.ne.s32.totalorder %s81, %s83
      %p90 = scmp.eq.s32.totalorder %s17, 3
      %p91 = por %p89, %p90
      %p92 = scmp.ne.s32.totalorder %s83, %s84
      %p93 = scmp.eq.s32.totalorder %s17, 0
      %p94 = por %p92, %p93
      %p95 = scmp.ne.s32.totalorder %s83, %s84
      %p96 = scmp.eq.s32.totalorder %s18, 3
      %p97 = por %p95, %p96
      %p99 = scmp.ne.s32.totalorder %s84, %s98
      %p100 = scmp.eq.s32.totalorder %s18, 0
      %p101 = por %p99, %p100
      %s102 = ssub.s32 %s19, %s31
      %s103 = ssub.s32 %s20, %s27
      %s104 = sor.u32 %s102, %s103
      %p105 = scmp.eq.s32.totalorder %s104, 0
      %s107 = sadd.s32 %s106, 1
      %s108 = scalar_select %p105, %s106, %s107
      %p111 = pneg %p105
      %p112 = scmp.eq.s32.totalorder %s12, 3
      %p113 = por %p111, %p112
      %p114 = scmp.ne.s32.totalorder %s106, %s109
      %p115 = scmp.eq.s32.totalorder %s12, 0
      %p116 = por %p114, %p115
      %p117 = scmp.ne.s32.totalorder %s106, %s109
      %p118 = scmp.eq.s32.totalorder %s17, 3
      %p119 = por %p117, %p118
      %p120 = scmp.ne.s32.totalorder %s109, %s110
      %p121 = scmp.eq.s32.totalorder %s17, 0
      %p122 = por %p120, %p121
      %p123 = scmp.ne.s32.totalorder %s109, %s110
      %p124 = scmp.eq.s32.totalorder %s18, 3
      %p125 = por %p123, %p124
      %p127 = scmp.ne.s32.totalorder %s110, %s126
      %p128 = scmp.eq.s32.totalorder %s18, 0
      %p129 = por %p127, %p128
      %p130 = scmp.le.s32.totalorder 1, %s12
      %p131 = scmp.lt.s32.totalorder %s12, 5
      %p132 = pnand %p130, %p131
      %p133 = pneg %p132
      // Predicated region
      $region9: #{tpu_custom_call.1} parent=5 // pred_check
        _
      $region10: #{tpu_custom_call.1} parent=5 // pred_check_branch
        %135 = sbr.rel (%p132) target = $region12
      $region11: #{tpu_custom_call.1} parent=5 // pred_region
        %s136 = ssub.s32 %s12, 1
        // Predicated region
        $region13: #{tpu_custom_call.1} parent=11 // pred_check
          %p137 = pneg %p73
        $region14: #{tpu_custom_call.1} parent=11 // pred_check_branch
          %139 = sbr.rel (%p137) target = $region16
        $region15: #{tpu_custom_call.1} parent=11 // pred_region
          _
        $region16: #{tpu_custom_call.1} parent=11 // pred_fallthru
          _
        // Predicated region
        $region17: #{tpu_custom_call.1} parent=11 // pred_check
          %p140 = pneg %p94
        $region18: #{tpu_custom_call.1} parent=11 // pred_check_branch
          %142 = sbr.rel (%p140) target = $region20
        $region19: #{tpu_custom_call.1} parent=11 // pred_region
          _
        $region20: #{tpu_custom_call.1} parent=11 // pred_fallthru
          _
      $region12: #{tpu_custom_call.1} parent=5 // pred_fallthru
        _
      %p143 = scmp.lt.s32.totalorder %s12, 4
      // Predicated region
      $region21: #{tpu_custom_call.1} parent=5 // pred_check
        %p144 = pneg %p143
      $region22: #{tpu_custom_call.1} parent=5 // pred_check_branch
        %146 = sbr.rel (%p144) target = $region24
      $region23: #{tpu_custom_call.1} parent=5 // pred_region
        // Predicated region
        $region25: #{tpu_custom_call.1} parent=23 // pred_check
          %p147 = pneg %p46
        $region26: #{tpu_custom_call.1} parent=23 // pred_check_branch
          %149 = sbr.rel (%p147) target = $region28
        $region27: #{tpu_custom_call.1} parent=23 // pred_region
          %p150 = scmp.lt.s32.totalorder %s19, 1
          %s151 = scalar_select %p150, %s19, 1
          %p152 = scmp.lt.s32.totalorder %s20, 1
          %s153 = scalar_select %p152, %s20, 1
          %s154 = smul.addr %s153, 12
          %s155 = smul.addr %s151, 24
          %s156 = sadd.s32 %s154, %s155
          %s157 = smul.addr %s156, 4
          %s158 = scalar_lea.vmem %s0, %s157
        $region28: #{tpu_custom_call.1} parent=23 // pred_fallthru
          _
      $region24: #{tpu_custom_call.1} parent=5 // pred_fallthru
        _
      %p159 = scmp.le.s32.totalorder 1, %s12
      %p160 = scmp.lt.s32.totalorder %s12, 5
      %p161 = pnand %p159, %p160
      %p162 = pneg %p161
      // Predicated region
      $region29: #{tpu_custom_call.1} parent=5 // pred_check
        _
      $region30: #{tpu_custom_call.1} parent=5 // pred_check_branch
        %164 = sbr.rel (%p161) target = $region32
      $region31: #{tpu_custom_call.1} parent=5 // pred_region
        %s165 = ssub.s32 %s12, 1
        %p166 = scmp.lt.s32.totalorder %s21, 1
        %s167 = scalar_select %p166, %s21, 1
        %p168 = scmp.lt.s32.totalorder %s22, 1
        %s169 = scalar_select %p168, %s22, 1
        %s170 = smul.addr %s169, 12
        %s171 = smul.addr %s167, 24
        %s172 = sadd.s32 %s170, %s171
        %s173 = smul.addr %s172, 4
        %s174 = scalar_lea.vmem %s0, %s173
        %p175 = pneg %p52
        %p176 = pneg %p49
        %p177 = pneg %p73
        %p178 = pneg %p70
        %p179 = pneg %p94
        %p180 = pneg %p91
        %p181 = pneg %p122
        %p182 = pneg %p119
        %s183 = sand.u32 %s109, 1
        %s184 = scalar_lea.sflag [#allocation4], %s183
        %s185 = sand.u32 %s109, 1
        %s186 = smul.addr %s185, 16
        %s187 = scalar_lea.vmem [#allocation3], %s186
        %p188 = scmp.lt.s32.totalorder %s21, 1
        %s189 = scalar_select %p188, %s21, 1
        %p190 = scmp.lt.s32.totalorder %s22, 1
        %s191 = scalar_select %p190, %s22, 1
        %s192 = smul.addr %s191, 12
        %s193 = smul.addr %s189, 24
        %s194 = sadd.s32 %s192, %s193
        %s195 = smul.addr %s194, 4
        %s196 = scalar_lea.vmem %s0, %s195
        %s197 = smul.u32 4, %s22
        %vm199 = vcmask 523264
        %200 = vst.msk [vmem:[#allocation2] sm:$0xff] %vm199, 0.0
        %201 = vst.msk [vmem:[#allocation2 + $0x8] sm:$0xff] %vm199, 0.0
        %202 = vst.msk [vmem:[#allocation2 + $0x10] sm:$0xff] %vm199, 0.0
        %203 = vst.msk [vmem:[#allocation2 + $0x18] sm:$0xff] %vm199, 0.0
        %v204 = vld [vmem:[%s196] sm:$0xf]
        %v205 = vld [vmem:[%s196 + $0x8] sm:$0xf]
        %v206 = vld [vmem:[%s196 + $0x10] sm:$0xf]
        %v207 = vld [vmem:[%s196 + $0x18] sm:$0xf]
        %v208 = vld [vmem:[%s196 + $0x4] sm:$0x1]
        %v209 = vld [vmem:[%s196 + $0xc] sm:$0x1]
        %v210 = vld [vmem:[%s196 + $0x14] sm:$0x1]
        %v211 = vld [vmem:[%s196 + $0x1c] sm:$0x1]
        %v212 = vld [vmem:[%s196] sm:$0xe]
        %v213 = vld [vmem:[%s196 + $0x8] sm:$0xe]
        %v214 = vld [vmem:[%s196 + $0x10] sm:$0xe]
        %v215 = vld [vmem:[%s196 + $0x18] sm:$0xe]
        %v224 = vunpack.c.l.b16 %v204
        %v225 = vunpack.c.l.b16 %v208
        %v226 = vunpack.c.l.b16 %v205
        %v227 = vunpack.c.l.b16 %v209
        %v228 = vunpack.c.l.b16 %v206
        %v229 = vunpack.c.l.b16 %v210
        %v230 = vunpack.c.l.b16 %v207
        %v231 = vunpack.c.l.b16 %v211
        %v232 = vpack.c.b16 %v225, %v224
        %v233 = vpack.c.b16 %v227, %v226
        %v234 = vpack.c.b16 %v229, %v228
        %v235 = vpack.c.b16 %v231, %v230
        %v237 = vshrl.u32 %v232, 16
        %v239 = vshll.u32 %v232, 16
        %v241 = vrot.slane %v239, 1
        %v242 = vor.u32 %v237, %v241
        %v244 = vshrl.u32 %v233, 16
        %v246 = vshll.u32 %v233, 16
        %v248 = vrot.slane %v246, 1
        %v249 = vor.u32 %v244, %v248
        %v251 = vshrl.u32 %v234, 16
        %v253 = vshll.u32 %v234, 16
        %v255 = vrot.slane %v253, 1
        %v256 = vor.u32 %v251, %v255
        %v258 = vshrl.u32 %v235, 16
        %v260 = vshll.u32 %v235, 16
        %v262 = vrot.slane %v260, 1
        %v263 = vor.u32 %v258, %v262
        %264 = vrot.lane.b32.xlu0 %v242, 3
        %v265 = vpop.permute.xlu0 %264
        %266 = vrot.lane.b32.xlu0 %v249, 3
        %v267 = vpop.permute.xlu0 %266
        %268 = vrot.lane.b32.xlu0 %v256, 3
        %v269 = vpop.permute.xlu0 %268
        %270 = vrot.lane.b32.xlu0 %v263, 3
        %v271 = vpop.permute.xlu0 %270
        %v276 = vunpack.c.l.b16 %v212
        %v277 = vunpack.c.l.b16 %v213
        %v278 = vunpack.c.l.b16 %v214
        %v279 = vunpack.c.l.b16 %v215
        %v280 = vpack.c.b16 %v225, %v276
        %v281 = vpack.c.b16 %v227, %v277
        %v282 = vpack.c.b16 %v229, %v278
        %v283 = vpack.c.b16 %v231, %v279
        %v284 = vrot.slane %v280, 1
        %v285 = vrot.slane %v281, 1
        %v286 = vrot.slane %v282, 1
        %v287 = vrot.slane %v283, 1
        %288 = vrot.lane.b32.xlu0 %v284, 6
        %v289 = vpop.permute.xlu0 %288
        %290 = vrot.lane.b32.xlu0 %v285, 6
        %v291 = vpop.permute.xlu0 %290
        %292 = vrot.lane.b32.xlu0 %v286, 6
        %v293 = vpop.permute.xlu0 %292
        %294 = vrot.lane.b32.xlu0 %v287, 6
        %v295 = vpop.permute.xlu0 %294
        %vm296 = vcmask 23552
        %v299 = vsel %vm296, %v204, %v265
        %v302 = vsel %vm296, %v205, %v267
        %v305 = vsel %vm296, %v206, %v269
        %v308 = vsel %vm296, %v207, %v271
        %vm309 = vcmask 48128
        %v311 = vsel %vm309, %v299, %v289
        %v313 = vsel %vm309, %v302, %v291
        %v315 = vsel %vm309, %v305, %v293
        %v317 = vsel %vm309, %v308, %v295
        %v318 = vld [vmem:[#allocation2] sm:$0xff]
        %v319 = vld [vmem:[#allocation2 + $0x8] sm:$0xff]
        %v320 = vld [vmem:[#allocation2 + $0x10] sm:$0xff]
        %v321 = vld [vmem:[#allocation2 + $0x18] sm:$0xff]
        %v322 = vld [vmem:[%s1] sm:$0xf]
        %v323 = vld [vmem:[%s1 + $0x4] sm:$0x1]
        %v328 = vunpack.c.l.b16 %v311
        %v329 = vunpack.c.l.b16 %v313
        %v330 = vunpack.c.l.b16 %v315
        %v331 = vunpack.c.l.b16 %v317
        %v332 = vpack.c.b16 %v329, %v328
        %v333 = vpack.c.b16 %v331, %v330
        %v336 = vunpack.c.l.b16 %v322
        %v337 = vunpack.c.l.b16 %v323
        %v338 = vpack.c.b16 %v337, %v336
        %vm339 = vcmask 72704
        %v341 = vsel %vm339, %v332, 0
        %v344 = vsel %vm339, %v333, 0
        %vm346 = vcmask 1043456
        %vm347 = vcmask 1044480
        %v348 = vsel %vm346, 4294967295, 65535
        %v349 = vsel %vm347, %v348, 0
        %v351 = vand.u32 %v338, %v349
        %353 = vmatprep.subr.bf16.mxu0 0
        %354 = vmatpush1.bf16.msra.mxu0 %v351
        %355 = vmatprep.subr.bf16.mxu0 0
        %356 = vmatpush1.bf16.msra.mxu0 0
        %357 = vmatprep.subr.bf16.mxu0 0
        %358 = vmatpush1.bf16.msra.mxu0 0
        %359 = vmatprep.subr.bf16.mxu0 0
        %360 = vmatpush1.bf16.msra.mxu0 0
        %361 = vmatprep.subr.bf16.mxu0 0
        %362 = vmatpush1.bf16.msra.mxu0 0
        %363 = vmatprep.subr.bf16.mxu0 0
        %364 = vmatpush1.bf16.msra.mxu0 0
        %365 = vmatprep.subr.bf16.mxu0 0
        %366 = vmatpush1.bf16.msra.mxu0 0
        %367 = vmatprep.subr.bf16.mxu0 0
        %368 = vmatpush1.bf16.msra.mxu0 0
        %369 = vmatprep.subr.bf16.mxu0 0
        %370 = vmatpush1.bf16.msra.mxu0 0
        %371 = vmatprep.subr.bf16.mxu0 0
        %372 = vmatpush1.bf16.msra.mxu0 0
        %373 = vmatprep.subr.bf16.mxu0 0
        %374 = vmatpush1.bf16.msra.mxu0 0
        %375 = vmatprep.subr.bf16.mxu0 0
        %376 = vmatpush1.bf16.msra.mxu0 0
        %377 = vmatprep.subr.bf16.mxu0 0
        %378 = vmatpush1.bf16.msra.mxu0 0
        %379 = vmatprep.subr.bf16.mxu0 0
        %380 = vmatpush1.bf16.msra.mxu0 0
        %381 = vmatprep.subr.bf16.mxu0 0
        %382 = vmatpush1.bf16.msra.mxu0 0
        %383 = vmatprep.subr.bf16.mxu0 0
        %384 = vmatpush1.bf16.msra.mxu0 0
        %385 = vmatprep.mubr.bf16.mxu0 0
        %386 = vmatmul.mubr.bf16.gmra.mrb[0].mxu0 %v341
        %v387 = vpop.f32.mrb[0].mxu0
        %v388 = vadd.f32 0.0, %v387
        %v389 = vpop.f32.mrb[0].mxu0
        %v390 = vpop.f32.mrb[0].mxu0
        %v391 = vadd.f32 0.0, %v390
        %v392 = vpop.f32.mrb[0].mxu0
        %393 = vmatprep.mubr.bf16.mxu0 0
        %394 = vmatmul.mubr.bf16.gmra.mrb[0].mxu0 %v344
        %v395 = vpop.f32.mrb[0].mxu0
        %v396 = vadd.f32 0.0, %v395
        %v397 = vpop.f32.mrb[0].mxu0
        %v398 = vpop.f32.mrb[0].mxu0
        %v399 = vadd.f32 0.0, %v398
        %v400 = vpop.f32.mrb[0].mxu0
        %401 = vdwg.mxu0
        %v402 = vadd.f32 %v318, %v388
        %v403 = vadd.f32 %v319, %v391
        %v404 = vadd.f32 %v320, %v396
        %v405 = vadd.f32 %v321, %v399
        %406 = vst.msk [vmem:[#allocation2] sm:$0xff] %vm199, %v402
        %407 = vst.msk [vmem:[#allocation2 + $0x8] sm:$0xff] %vm199, %v403
        %408 = vst.msk [vmem:[#allocation2 + $0x10] sm:$0xff] %vm199, %v404
        %409 = vst.msk [vmem:[#allocation2 + $0x18] sm:$0xff] %vm199, %v405
        %s410 = scalar_lea.vmem %s196, 8
        %v411 = vld [vmem:[%s410] sm:$0xf]
        %v412 = vld [vmem:[%s410 + $0x8] sm:$0xf]
        %v413 = vld [vmem:[%s410 + $0x10] sm:$0xf]
        %v414 = vld [vmem:[%s410 + $0x18] sm:$0xf]
        %v415 = vld [vmem:[%s410 + $0x4] sm:$0x1]
        %v416 = vld [vmem:[%s410 + $0xc] sm:$0x1]
        %v417 = vld [vmem:[%s410 + $0x14] sm:$0x1]
        %v418 = vld [vmem:[%s410 + $0x1c] sm:$0x1]
        %v419 = vld [vmem:[%s410] sm:$0xe]
        %v420 = vld [vmem:[%s410 + $0x8] sm:$0xe]
        %v421 = vld [vmem:[%s410 + $0x10] sm:$0xe]
        %v422 = vld [vmem:[%s410 + $0x18] sm:$0xe]
        %v431 = vunpack.c.l.b16 %v411
        %v432 = vunpack.c.l.b16 %v415
        %v433 = vunpack.c.l.b16 %v412
        %v434 = vunpack.c.l.b16 %v416
        %v435 = vunpack.c.l.b16 %v413
        %v436 = vunpack.c.l.b16 %v417
        %v437 = vunpack.c.l.b16 %v414
        %v438 = vunpack.c.l.b16 %v418
        %v439 = vpack.c.b16 %v432, %v431
        %v440 = vpack.c.b16 %v434, %v433
        %v441 = vpack.c.b16 %v436, %v435
        %v442 = vpack.c.b16 %v438, %v437
        %v444 = vshrl.u32 %v439, 16
        %v446 = vshll.u32 %v439, 16
        %v448 = vrot.slane %v446, 1
        %v449 = vor.u32 %v444, %v448
        %v451 = vshrl.u32 %v440, 16
        %v453 = vshll.u32 %v440, 16
        %v455 = vrot.slane %v453, 1
        %v456 = vor.u32 %v451, %v455
        %v458 = vshrl.u32 %v441, 16
        %v460 = vshll.u32 %v441, 16
        %v462 = vrot.slane %v460, 1
        %v463 = vor.u32 %v458, %v462
        %v465 = vshrl.u32 %v442, 16
        %v467 = vshll.u32 %v442, 16
        %v469 = vrot.slane %v467, 1
        %v470 = vor.u32 %v465, %v469
        %471 = vrot.lane.b32.xlu0 %v449, 3
        %v472 = vpop.permute.xlu0 %471
        %473 = vrot.lane.b32.xlu0 %v456, 3
        %v474 = vpop.permute.xlu0 %473
        %475 = vrot.lane.b32.xlu0 %v463, 3
        %v476 = vpop.permute.xlu0 %475
        %477 = vrot.lane.b32.xlu0 %v470, 3
        %v478 = vpop.permute.xlu0 %477
        %v483 = vunpack.c.l.b16 %v419
        %v484 = vunpack.c.l.b16 %v420
        %v485 = vunpack.c.l.b16 %v421
        %v486 = vunpack.c.l.b16 %v422
        %v487 = vpack.c.b16 %v432, %v483
        %v488 = vpack.c.b16 %v434, %v484
        %v489 = vpack.c.b16 %v436, %v485
        %v490 = vpack.c.b16 %v438, %v486
        %v491 = vrot.slane %v487, 1
        %v492 = vrot.slane %v488, 1
        %v493 = vrot.slane %v489, 1
        %v494 = vrot.slane %v490, 1
        %495 = vrot.lane.b32.xlu0 %v491, 6
        %v496 = vpop.permute.xlu0 %495
        %497 = vrot.lane.b32.xlu0 %v492, 6
        %v498 = vpop.permute.xlu0 %497
        %499 = vrot.lane.b32.xlu0 %v493, 6
        %v500 = vpop.permute.xlu0 %499
        %501 = vrot.lane.b32.xlu0 %v494, 6
        %v502 = vpop.permute.xlu0 %501
        %v505 = vsel %vm296, %v411, %v472
        %v508 = vsel %vm296, %v412, %v474
        %v511 = vsel %vm296, %v413, %v476
        %v514 = vsel %vm296, %v414, %v478
        %v516 = vsel %vm309, %v505, %v496
        %v518 = vsel %vm309, %v508, %v498
        %v520 = vsel %vm309, %v511, %v500
        %v522 = vsel %vm309, %v514, %v502
        %v523 = vld [vmem:[#allocation2] sm:$0xff]
        %v524 = vld [vmem:[#allocation2 + $0x8] sm:$0xff]
        %v525 = vld [vmem:[#allocation2 + $0x10] sm:$0xff]
        %v526 = vld [vmem:[#allocation2 + $0x18] sm:$0xff]
        %s527 = scalar_lea.vmem %s1, 8
        %v528 = vld [vmem:[%s527] sm:$0xf]
        %v529 = vld [vmem:[%s527 + $0x4] sm:$0x1]
        %v534 = vunpack.c.l.b16 %v516
        %v535 = vunpack.c.l.b16 %v518
        %v536 = vunpack.c.l.b16 %v520
        %v537 = vunpack.c.l.b16 %v522
        %v538 = vpack.c.b16 %v535, %v534
        %v539 = vpack.c.b16 %v537, %v536
        %v542 = vunpack.c.l.b16 %v528
        %v543 = vunpack.c.l.b16 %v529
        %v544 = vpack.c.b16 %v543, %v542
        %v546 = vsel %vm339, %v538, 0
        %v549 = vsel %vm339, %v539, 0
        %v552 = vand.u32 %v544, %v349
        %554 = vmatprep.subr.bf16.mxu0 0
        %555 = vmatpush1.bf16.msra.mxu0 %v552
        %556 = vmatprep.subr.bf16.mxu0 0
        %557 = vmatpush1.bf16.msra.mxu0 0
        %558 = vmatprep.subr.bf16.mxu0 0
        %559 = vmatpush1.bf16.msra.mxu0 0
        %560 = vmatprep.subr.bf16.mxu0 0
        %561 = vmatpush1.bf16.msra.mxu0 0
        %562 = vmatprep.subr.bf16.mxu0 0
        %563 = vmatpush1.bf16.msra.mxu0 0
        %564 = vmatprep.subr.bf16.mxu0 0
        %565 = vmatpush1.bf16.msra.mxu0 0
        %566 = vmatprep.subr.bf16.mxu0 0
        %567 = vmatpush1.bf16.msra.mxu0 0
        %568 = vmatprep.subr.bf16.mxu0 0
        %569 = vmatpush1.bf16.msra.mxu0 0
        %570 = vmatprep.subr.bf16.mxu0 0
        %571 = vmatpush1.bf16.msra.mxu0 0
        %572 = vmatprep.subr.bf16.mxu0 0
        %573 = vmatpush1.bf16.msra.mxu0 0
        %574 = vmatprep.subr.bf16.mxu0 0
        %575 = vmatpush1.bf16.msra.mxu0 0
        %576 = vmatprep.subr.bf16.mxu0 0
        %577 = vmatpush1.bf16.msra.mxu0 0
        %578 = vmatprep.subr.bf16.mxu0 0
        %579 = vmatpush1.bf16.msra.mxu0 0
        %580 = vmatprep.subr.bf16.mxu0 0
        %581 = vmatpush1.bf16.msra.mxu0 0
        %582 = vmatprep.subr.bf16.mxu0 0
        %583 = vmatpush1.bf16.msra.mxu0 0
        %584 = vmatprep.subr.bf16.mxu0 0
        %585 = vmatpush1.bf16.msra.mxu0 0
        %586 = vmatprep.mubr.bf16.mxu0 0
        %587 = vmatmul.mubr.bf16.gmra.mrb[0].mxu0 %v546
        %v588 = vpop.f32.mrb[0].mxu0
        %v589 = vadd.f32 0.0, %v588
        %v590 = vpop.f32.mrb[0].mxu0
        %v591 = vpop.f32.mrb[0].mxu0
        %v592 = vadd.f32 0.0, %v591
        %v593 = vpop.f32.mrb[0].mxu0
        %594 = vmatprep.mubr.bf16.mxu0 0
        %595 = vmatmul.mubr.bf16.gmra.mrb[0].mxu0 %v549
        %v596 = vpop.f32.mrb[0].mxu0
        %v597 = vadd.f32 0.0, %v596
        %v598 = vpop.f32.mrb[0].mxu0
        %v599 = vpop.f32.mrb[0].mxu0
        %v600 = vadd.f32 0.0, %v599
        %v601 = vpop.f32.mrb[0].mxu0
        %602 = vdwg.mxu0
        %v603 = vadd.f32 %v523, %v589
        %v604 = vadd.f32 %v524, %v592
        %v605 = vadd.f32 %v525, %v597
        %v606 = vadd.f32 %v526, %v600
        %607 = vst.msk [vmem:[#allocation2] sm:$0xff] %vm199, %v603
        %608 = vst.msk [vmem:[#allocation2 + $0x8] sm:$0xff] %vm199, %v604
        %609 = vst.msk [vmem:[#allocation2 + $0x10] sm:$0xff] %vm199, %v605
        %610 = vst.msk [vmem:[#allocation2 + $0x18] sm:$0xff] %vm199, %v606
        %s611 = scalar_lea.vmem %s196, 16
        %v612 = vld [vmem:[%s611] sm:$0xf]
        %v613 = vld [vmem:[%s611 + $0x8] sm:$0xf]
        %v614 = vld [vmem:[%s611 + $0x10] sm:$0xf]
        %v615 = vld [vmem:[%s611 + $0x18] sm:$0xf]
        %v616 = vld [vmem:[%s611 + $0x4] sm:$0x1]
        %v617 = vld [vmem:[%s611 + $0xc] sm:$0x1]
        %v618 = vld [vmem:[%s611 + $0x14] sm:$0x1]
        %v619 = vld [vmem:[%s611 + $0x1c] sm:$0x1]
        %v620 = vld [vmem:[%s611] sm:$0xe]
        %v621 = vld [vmem:[%s611 + $0x8] sm:$0xe]
        %v622 = vld [vmem:[%s611 + $0x10] sm:$0xe]
        %v623 = vld [vmem:[%s611 + $0x18] sm:$0xe]
        %v632 = vunpack.c.l.b16 %v612
        %v633 = vunpack.c.l.b16 %v616
        %v634 = vunpack.c.l.b16 %v613
        %v635 = vunpack.c.l.b16 %v617
        %v636 = vunpack.c.l.b16 %v614
        %v637 = vunpack.c.l.b16 %v618
        %v638 = vunpack.c.l.b16 %v615
        %v639 = vunpack.c.l.b16 %v619
        %v640 = vpack.c.b16 %v633, %v632
        %v641 = vpack.c.b16 %v635, %v634
        %v642 = vpack.c.b16 %v637, %v636
        %v643 = vpack.c.b16 %v639, %v638
        %v645 = vshrl.u32 %v640, 16
        %v647 = vshll.u32 %v640, 16
        %v649 = vrot.slane %v647, 1
        %v650 = vor.u32 %v645, %v649
        %v652 = vshrl.u32 %v641, 16
        %v654 = vshll.u32 %v641, 16
        %v656 = vrot.slane %v654, 1
        %v657 = vor.u32 %v652, %v656
        %v659 = vshrl.u32 %v642, 16
        %v661 = vshll.u32 %v642, 16
        %v663 = vrot.slane %v661, 1
        %v664 = vor.u32 %v659, %v663
        %v666 = vshrl.u32 %v643, 16
        %v668 = vshll.u32 %v643, 16
        %v670 = vrot.slane %v668, 1
        %v671 = vor.u32 %v666, %v670
        %672 = vrot.lane.b32.xlu0 %v650, 3
        %v673 = vpop.permute.xlu0 %672
        %674 = vrot.lane.b32.xlu0 %v657, 3
        %v675 = vpop.permute.xlu0 %674
        %676 = vrot.lane.b32.xlu0 %v664, 3
        %v677 = vpop.permute.xlu0 %676
        %678 = vrot.lane.b32.xlu0 %v671, 3
        %v679 = vpop.permute.xlu0 %678
        %v684 = vunpack.c.l.b16 %v620
        %v685 = vunpack.c.l.b16 %v621
        %v686 = vunpack.c.l.b16 %v622
        %v687 = vunpack.c.l.b16 %v623
        %v688 = vpack.c.b16 %v633, %v684
        %v689 = vpack.c.b16 %v635, %v685
        %v690 = vpack.c.b16 %v637, %v686
        %v691 = vpack.c.b16 %v639, %v687
        %v692 = vrot.slane %v688, 1
        %v693 = vrot.slane %v689, 1
        %v694 = vrot.slane %v690, 1
        %v695 = vrot.slane %v691, 1
        %696 = vrot.lane.b32.xlu0 %v692, 6
        %v697 = vpop.permute.xlu0 %696
        %698 = vrot.lane.b32.xlu0 %v693, 6
        %v699 = vpop.permute.xlu0 %698
        %700 = vrot.lane.b32.xlu0 %v694, 6
        %v701 = vpop.permute.xlu0 %700
        %702 = vrot.lane.b32.xlu0 %v695, 6
        %v703 = vpop.permute.xlu0 %702
        %v706 = vsel %vm296, %v612, %v673
        %v709 = vsel %vm296, %v613, %v675
        %v712 = vsel %vm296, %v614, %v677
        %v715 = vsel %vm296, %v615, %v679
        %v717 = vsel %vm309, %v706, %v697
        %v719 = vsel %vm309, %v709, %v699
        %v721 = vsel %vm309, %v712, %v701
        %v723 = vsel %vm309, %v715, %v703
        %v724 = vld [vmem:[#allocation2] sm:$0xff]
        %v725 = vld [vmem:[#allocation2 + $0x8] sm:$0xff]
        %v726 = vld [vmem:[#allocation2 + $0x10] sm:$0xff]
        %v727 = vld [vmem:[#allocation2 + $0x18] sm:$0xff]
        %s728 = scalar_lea.vmem %s1, 16
        %v729 = vld [vmem:[%s728] sm:$0xf]
        %v730 = vld [vmem:[%s728 + $0x4] sm:$0x1]
        %v735 = vunpack.c.l.b16 %v717
        %v736 = vunpack.c.l.b16 %v719
        %v737 = vunpack.c.l.b16 %v721
        %v738 = vunpack.c.l.b16 %v723
        %v739 = vpack.c.b16 %v736, %v735
        %v740 = vpack.c.b16 %v738, %v737
        %v743 = vunpack.c.l.b16 %v729
        %v744 = vunpack.c.l.b16 %v730
        %v745 = vpack.c.b16 %v744, %v743
        %v747 = vsel %vm339, %v739, 0
        %v750 = vsel %vm339, %v740, 0
        %v753 = vand.u32 %v745, %v349
        %755 = vmatprep.subr.bf16.mxu0 0
        %756 = vmatpush1.bf16.msra.mxu0 %v753
        %757 = vmatprep.subr.bf16.mxu0 0
        %758 = vmatpush1.bf16.msra.mxu0 0
        %759 = vmatprep.subr.bf16.mxu0 0
        %760 = vmatpush1.bf16.msra.mxu0 0
        %761 = vmatprep.subr.bf16.mxu0 0
        %762 = vmatpush1.bf16.msra.mxu0 0
        %763 = vmatprep.subr.bf16.mxu0 0
        %764 = vmatpush1.bf16.msra.mxu0 0
        %765 = vmatprep.subr.bf16.mxu0 0
        %766 = vmatpush1.bf16.msra.mxu0 0
        %767 = vmatprep.subr.bf16.mxu0 0
        %768 = vmatpush1.bf16.msra.mxu0 0
        %769 = vmatprep.subr.bf16.mxu0 0
        %770 = vmatpush1.bf16.msra.mxu0 0
        %771 = vmatprep.subr.bf16.mxu0 0
        %772 = vmatpush1.bf16.msra.mxu0 0
        %773 = vmatprep.subr.bf16.mxu0 0
        %774 = vmatpush1.bf16.msra.mxu0 0
        %775 = vmatprep.subr.bf16.mxu0 0
        %776 = vmatpush1.bf16.msra.mxu0 0
        %777 = vmatprep.subr.bf16.mxu0 0
        %778 = vmatpush1.bf16.msra.mxu0 0
        %779 = vmatprep.subr.bf16.mxu0 0
        %780 = vmatpush1.bf16.msra.mxu0 0
        %781 = vmatprep.subr.bf16.mxu0 0
        %782 = vmatpush1.bf16.msra.mxu0 0
        %783 = vmatprep.subr.bf16.mxu0 0
        %784 = vmatpush1.bf16.msra.mxu0 0
        %785 = vmatprep.subr.bf16.mxu0 0
        %786 = vmatpush1.bf16.msra.mxu0 0
        %787 = vmatprep.mubr.bf16.mxu0 0
        %788 = vmatmul.mubr.bf16.gmra.mrb[0].mxu0 %v747
        %v789 = vpop.f32.mrb[0].mxu0
        %v790 = vadd.f32 0.0, %v789
        %v791 = vpop.f32.mrb[0].mxu0
        %v792 = vpop.f32.mrb[0].mxu0
        %v793 = vadd.f32 0.0, %v792
        %v794 = vpop.f32.mrb[0].mxu0
        %795 = vmatprep.mubr.bf16.mxu0 0
        %796 = vmatmul.mubr.bf16.gmra.mrb[0].mxu0 %v750
        %v797 = vpop.f32.mrb[0].mxu0
        %v798 = vadd.f32 0.0, %v797
        %v799 = vpop.f32.mrb[0].mxu0
        %v800 = vpop.f32.mrb[0].mxu0
        %v801 = vadd.f32 0.0, %v800
        %v802 = vpop.f32.mrb[0].mxu0
        %803 = vdwg.mxu0
        %v804 = vadd.f32 %v724, %v790
        %v805 = vadd.f32 %v725, %v793
        %v806 = vadd.f32 %v726, %v798
        %v807 = vadd.f32 %v727, %v801
        %808 = vst.msk [vmem:[#allocation2] sm:$0xff] %vm199, %v804
        %809 = vst.msk [vmem:[#allocation2 + $0x8] sm:$0xff] %vm199, %v805
        %810 = vst.msk [vmem:[#allocation2 + $0x10] sm:$0xff] %vm199, %v806
        %811 = vst.msk [vmem:[#allocation2 + $0x18] sm:$0xff] %vm199, %v807
        %v812 = vld [vmem:[#allocation2] sm:$0xff]
        %v813 = vld [vmem:[#allocation2 + $0x8] sm:$0xff]
        %v814 = vld [vmem:[#allocation2 + $0x10] sm:$0xff]
        %v815 = vld [vmem:[#allocation2 + $0x18] sm:$0xff]
        %v816 = vld [vmem:[%s2] sm:$0x1]
        %v818 = vlaneseq
        %v819 = vshrl.u32 %v818, 7
        %v820 = vsub.s32 0, %v819
        %v821 = vrot.slane %v816, %v820
        %v823 = vadd.f32 %v812, %v821
        %v824 = vadd.f32 %v813, %v821
        %v825 = vadd.f32 %v814, %v821
        %v826 = vadd.f32 %v815, %v821
        %v827 = vpack.c.bf16 %v823, %v823
        %v828 = vpack.c.bf16 %v824, %v824
        %v829 = vpack.c.bf16 %v825, %v825
        %v830 = vpack.c.bf16 %v826, %v826
        %vm831 = vcmask 519168
        %832 = vst.msk [vmem:[%s187] sm:$0xf] %vm831, %v827
        %833 = vst.msk [vmem:[%s187 + $0x4] sm:$0xf] %vm831, %v828
        %834 = vst.msk [vmem:[%s187 + $0x8] sm:$0xf] %vm831, %v829
        %835 = vst.msk [vmem:[%s187 + $0xc] sm:$0xf] %vm831, %v830
        %s836 = sand.u32 %s109, 1
        %s837 = scalar_lea.sflag [#allocation4], %s836
        %s838 = sand.u32 %s109, 1
        %s839 = smul.addr %s838, 16
        %s840 = scalar_lea.vmem [#allocation3], %s839
        // Predicated region
        $region33: #{tpu_custom_call.1} parent=31 // pred_check
          %p841 = pneg %p119
        $region34: #{tpu_custom_call.1} parent=31 // pred_check_branch
          %843 = sbr.rel (%p841) target = $region36
        $region35: #{tpu_custom_call.1} parent=31 // pred_region
          %s844 = smul.u32 4, %s22
          %s846 = ssub.s32 256, 256
          %847 = vsyncadd %s837, %s846
          %s848 = smul.addr %s21, 8
          %s849 = sadd.s32 %s844, %s848
          %s850 = smul.addr %s849, 64
          %s851 = scalar_lea.hbm %s3, %s850
          %s852 = sshll.u32 %s840, 4
          %s853 = int_to_ptr.vmem [resolvable:$true] %s852
          %858 = dma.vmem_to_hbm [thread:$0]  %s853, 256, %s851, %s837, 64, 64, 4
        $region36: #{tpu_custom_call.1} parent=31 // pred_fallthru
          _
      $region32: #{tpu_custom_call.1} parent=5 // pred_fallthru
        _
      %p859 = scmp.le.s32.totalorder 2, %s12
      // Predicated region
      $region37: #{tpu_custom_call.1} parent=5 // pred_check
        %p860 = pneg %p859
      $region38: #{tpu_custom_call.1} parent=5 // pred_check_branch
        %862 = sbr.rel (%p860) target = $region40
      $region39: #{tpu_custom_call.1} parent=5 // pred_region
        %s863 = ssub.s32 %s12, 2
        // Predicated region
        $region41: #{tpu_custom_call.1} parent=39 // pred_check
          %p864 = pneg %p125
        $region42: #{tpu_custom_call.1} parent=39 // pred_check_branch
          %866 = sbr.rel (%p864) target = $region44
        $region43: #{tpu_custom_call.1} parent=39 // pred_region
          %s867 = sand.u32 %s110, 1
          %s868 = scalar_lea.sflag [#allocation4], %s867
          %s869 = sand.u32 %s110, 1
          %s870 = smul.addr %s869, 16
          %s871 = scalar_lea.vmem [#allocation3], %s870
          %872 = dma.done %s868, 256
        $region44: #{tpu_custom_call.1} parent=39 // pred_fallthru
          _
      $region40: #{tpu_custom_call.1} parent=5 // pred_fallthru
        _
    $region6: #{tpu_custom_call.1} parent=1 // loop_footer
      %s16 = sadd.s32 1, %s12
    $region7: #{tpu_custom_call.1} parent=1 // loop_footer_branch
      %11 = sbr.rel target = $region3
    $region8: #{tpu_custom_call.1} parent=1 // loop_exit
      _
    %873 = vsyncpa [#allocation4], 1
    %s874 = scalar_lea.sflag [#allocation4], 1
    %875 = vsyncpa %s874, 1

</llo_original>
